<compile_context>
chip_gen: v7x
topology: tpu7x:2x2x1
jax: 0.10.0
libtpu: 0.0.40
codegen_flags: <defaults>
</compile_context>

<pallas_src>
import jax
import jax.numpy as jnp
import numpy as np
from jax.experimental import pallas as pl
from jax.experimental.pallas import tpu as pltpu

EMBEDDING_DIM = 32
ATTENTION_HEADS = 4
N = 7                                     # sequence length = N + 1 = 8
SEQ = N + 1
DIV = EMBEDDING_DIM // ATTENTION_HEADS    # 8
BATCH = 2

BS = BATCH * SEQ                          # 16: rows of the flattened (B*S, E) activations
NROW = BATCH * ATTENTION_HEADS * SEQ      # 64: rows of the per-head flattened view
NCHUNK = EMBEDDING_DIM // DIV             # 4:  8-wide column chunks per activation row
RPB = (SEQ * DIV) // EMBEDDING_DIM        # 2:  activation rows per (batch, head) block
INV_SQRT_DIV = float(1.0 / np.sqrt(DIV))
NEG_INF = float(-1e30)


# ----------------------- static layout constants (numpy) ---------------------
# torch's reshape(-1, H, S, D) maps (b, s, e=8j+d) -> (b, h, q, d) with
#   h = (4s + j) // 8,  q = (4s + j) % 8.
# The kernel's "alt" row for (b, h, q) is   r = (q%4)*16 + 8b + 2h + q//4,
# which is exactly what a sublane-concat of the lane chunks j of the projected
# activations produces.  Build the nat<->alt permutations once with numpy.

def _alt_row(b, h, q):
    return (q % NCHUNK) * BS + b * SEQ + h * RPB + q // NCHUNK


_ALT_TO_NAT = np.zeros(NROW, dtype=np.int32)          # alt row -> natural (b,h,q) index
_PERM = np.zeros((NROW, NROW), dtype=np.float32)      # (h,b,q)-ordered row <- alt row
for _b in range(BATCH):
    for _h in range(ATTENTION_HEADS):
        for _q in range(SEQ):
            _r = _alt_row(_b, _h, _q)
            _ALT_TO_NAT[_r] = (_b * ATTENTION_HEADS + _h) * SEQ + _q
            _PERM[_h * BS + _b * SEQ + _q, _r] = 1.0

_BH_NAT = np.arange(NROW) // SEQ
_Q_NAT = np.arange(NROW) % SEQ
_SAME_HEAD_NAT = _BH_NAT[:, None] == _BH_NAT[None, :]


# ------------------------------ fused kernel --------------------------------

def _fused_mha_kernel(x_ref, w_ref, bm_ref, perm_ref, o_ref):
    f32 = jnp.float32
    x = x_ref[...]                          # (16, 32)  flattened embeddings
    w = w_ref[...]                          # (32, 128) [WQ/sqrt(D) | WK | WV | WO]

    # 1) fused Q|K|V projection; the 1/sqrt(D) scale is already in the WQ columns.
    qkv = jnp.dot(x, w[:, :3 * EMBEDDING_DIM], preferred_element_type=f32)   # (16, 96)

    # 2) quirky reshape -> "alt"-ordered (B*H*S, D) views, as register values
    #    (sublane concat of the 8-wide lane chunks; no scratch round trip).
    def alt(base):
        return jnp.concatenate(
            [qkv[:, base + j * DIV: base + (j + 1) * DIV] for j in range(NCHUNK)],
            axis=0)                                                           # (64, 8)

    q_alt = alt(0)
    k_alt = alt(EMBEDDING_DIM)
    v_alt = alt(2 * EMBEDDING_DIM)

    # 3) every per-head score matmul as one (64,8) x (64,8)^T MXU contraction.
    scores = jax.lax.dot_general(
        q_alt, k_alt, dimension_numbers=(((1,), (1,)), ((), ())),
        preferred_element_type=f32)                                           # (64, 64)

    # 4) precomputed scaled bias + block-diagonal head mask, then row softmax.
    #    Masked (-1e30) entries underflow to exactly 0 in exp(); every row keeps
    #    its own unmasked head block, so the denominator stays > 0.
    s = scores + bm_ref[...]
    m = jnp.max(s, axis=-1, keepdims=True)
    p = jnp.exp(s - m)
    denom = jnp.sum(p, axis=-1, keepdims=True)

    # 5) attention @ V with deferred normalization (multiply the small (64,8)
    #    result instead of the (64,64) probabilities).
    #    pl.reciprocal(approx=False): the approx path's ~2^-13 error would
    #    collide with the 1e-4 comparison tolerance.
    o_alt = jnp.dot(p, v_alt, preferred_element_type=f32)                     # (64, 8)
    o_alt = o_alt * pl.reciprocal(denom, approx=False)

    # 6) head recombine: precomputed 0/1 row permutation to (h, b, q) order,
    #    then lane-concat the per-head (16,8) blocks into H (16, 32).
    o_perm = jnp.dot(perm_ref[...], o_alt, preferred_element_type=f32)        # (64, 8)
    h16 = jnp.concatenate(
        [o_perm[h * BS:(h + 1) * BS, :] for h in range(ATTENTION_HEADS)],
        axis=1)                                                               # (16, 32)

    # 7) single H @ WO matmul.
    o_ref[...] = jnp.dot(h16, w[:, 3 * EMBEDDING_DIM:], preferred_element_type=f32)


# ----------------------------- wrapper helpers -------------------------------

def _biasmask_alt(b_matrix):
    """(64,64) f32: F.pad(B,(1,0,1,0))/sqrt(D) on the head-block diagonal
    (alt x alt layout), -1e30 everywhere else."""
    bias_p = jnp.pad(b_matrix.astype(jnp.float32),
                     ((0, 0), (0, 0), (1, 0), (1, 0)))                 # (B, H, S, S)
    bias_flat = bias_p.reshape(BATCH * ATTENTION_HEADS, SEQ, SEQ)
    vals = bias_flat[_BH_NAT[:, None], _Q_NAT[:, None], _Q_NAT[None, :]]     # (64, 64)
    nat = jnp.where(_SAME_HEAD_NAT, vals * INV_SQRT_DIV, NEG_INF)
    return nat[_ALT_TO_NAT[:, None], _ALT_TO_NAT[None, :]]


@jax.jit
def multi_head_attention(embeddings, b_matrix, WQ, WK, WV, WO):
    B, S, E = embeddings.shape
    x2d = embeddings.reshape(B * S, E)                                 # (16, 32)
    # One lane-dense (32, 128) weight operand; 1/sqrt(D) folded into WQ.
    w_packed = jnp.concatenate(
        [WQ * jnp.float32(INV_SQRT_DIV), WK, WV, WO], axis=1)          # (32, 128)
    biasmask = _biasmask_alt(b_matrix)                                 # (64, 64)
    perm = jnp.asarray(_PERM)                                          # (64, 64) const

    # Gridless call; everything is whole-array VMEM resident (<40 KB total).
    # TODO(synk): if BATCH/SEQ ever grow, add a "parallel" batch grid axis so
    #             v7x's two TensorCores split the work, and re-derive VMEM use.
    out2d = pl.pallas_call(
        _fused_mha_kernel,
        out_shape=jax.ShapeDtypeStruct((B * S, E), jnp.float32),
        in_specs=[
            pl.BlockSpec(memory_space=pltpu.MemorySpace.VMEM),
            pl.BlockSpec(memory_space=pltpu.MemorySpace.VMEM),
            pl.BlockSpec(memory_space=pltpu.MemorySpace.VMEM),
            pl.BlockSpec(memory_space=pltpu.MemorySpace.VMEM),
        ],
        out_specs=pl.BlockSpec(memory_space=pltpu.MemorySpace.VMEM),
    )(x2d, w_packed, biasmask, perm)
    return out2d.reshape(B, S, E)


# --------------------------- pure-JAX reference -----------------------------

def reference(embeddings, b_matrix, WQ, WK, WV, WO):
    B, S, E = embeddings.shape
    Qh = (embeddings @ WQ).reshape(B, ATTENTION_HEADS, S, DIV)
    Kh = jnp.transpose((embeddings @ WK).reshape(B, ATTENTION_HEADS, S, DIV),
                       (0, 1, 3, 2))
    Vh = (embeddings @ WV).reshape(B, ATTENTION_HEADS, S, DIV)
    bias = jnp.pad(b_matrix, ((0, 0), (0, 0), (1, 0), (1, 0)))
    attn = (Qh @ Kh + bias) / jnp.sqrt(jnp.float32(DIV))
    attn = jax.nn.softmax(attn, axis=-1)
    H = jnp.transpose(attn @ Vh, (0, 2, 1, 3)).reshape(B, S, E)
    return H @ WO


# ---------------------------------- main -------------------------------------

if __name__ == "__main__":
    key = jax.random.PRNGKey(0)
    k_emb, k_b, k_wq, k_wk, k_wv, k_wo = jax.random.split(key, 6)

    embeddings = jax.random.normal(k_emb, (BATCH, SEQ, EMBEDDING_DIM),
                                   dtype=jnp.float32)
    B_matrix = jax.random.normal(k_b, (BATCH, ATTENTION_HEADS, N, N),
                                 dtype=jnp.float32)
    WQ = jax.random.normal(k_wq, (EMBEDDING_DIM, EMBEDDING_DIM), jnp.float32)
    WK = jax.random.normal(k_wk, (EMBEDDING_DIM, EMBEDDING_DIM), jnp.float32)
    WV = jax.random.normal(k_wv, (EMBEDDING_DIM, EMBEDDING_DIM), jnp.float32)
    WO = jax.random.normal(k_wo, (EMBEDDING_DIM, EMBEDDING_DIM), jnp.float32)

    out = jax.block_until_ready(
        multi_head_attention(embeddings, B_matrix, WQ, WK, WV, WO))
    ref = jax.block_until_ready(
        reference(embeddings, B_matrix, WQ, WK, WV, WO))

    assert out.shape == (BATCH, SEQ, EMBEDDING_DIM)
    np.testing.assert_allclose(np.asarray(out), np.asarray(ref),
                               rtol=1e-4, atol=1e-4)
    print("KERNEL_OK")
</pallas_src>

<mosaic_0001>
module attributes {stable_mosaic.version = 11 : i64} {
  func.func private @main(%arg0: i32) attributes {dimension_semantics = [#tpu.dimension_semantics<core_parallel>], iteration_bounds = array<i64: 2>, tpu.core_type = #tpu.core_type<sc_scalar_subcore>, window_params = []} {
    return
  }
}

module attributes {stable_mosaic.version = 11 : i64} {
  func.func private @main(%arg0: i32) attributes {dimension_semantics = [#tpu.dimension_semantics<core_parallel>], iteration_bounds = array<i64: 2>, tpu.core_type = #tpu.core_type<sc_scalar_subcore>, window_params = []} {
    return
  }
}

module attributes {stable_mosaic.version = 11 : i64} {
  func.func @_fused_mha_kernel(%arg0: memref<16x32xf32, #tpu.memory_space<vmem>>, %arg1: memref<32x128xf32, #tpu.memory_space<vmem>>, %arg2: memref<64x64xf32, #tpu.memory_space<vmem>>, %arg3: memref<64x64xf32, #tpu.memory_space<vmem>>, %arg4: memref<16x32xf32, #tpu.memory_space<vmem>>) attributes {dimension_semantics = [], scalar_prefetch = 0 : i64, scratch_operands = 0 : i64, tpu.core_type = #tpu.core_type<tc>} {
    %c0 = arith.constant 0 : index
    %c0_0 = arith.constant 0 : index
    %0 = vector.load %arg0[%c0, %c0_0] : memref<16x32xf32, #tpu.memory_space<vmem>>, vector<16x32xf32>
    %c0_1 = arith.constant 0 : index
    %c0_2 = arith.constant 0 : index
    %1 = vector.load %arg1[%c0_1, %c0_2] : memref<32x128xf32, #tpu.memory_space<vmem>>, vector<32x128xf32>
    %2 = vector.extract_strided_slice %1 {offsets = [0, 0], sizes = [32, 96], strides = [1, 1]} : vector<32x128xf32> to vector<32x96xf32>
    %cst = arith.constant dense<0.000000e+00> : vector<16x96xf32>
    %3 = tpu.matmul %0, %2, %cst {dimension_numbers = #tpu.dot_dimension_numbers<[1], [0], [0], [1], [0, 0, 1, 1], [], []>} : vector<16x32xf32>, vector<32x96xf32>, vector<16x96xf32> -> vector<16x96xf32>
    %4 = vector.extract_strided_slice %3 {offsets = [0, 0], sizes = [16, 8], strides = [1, 1]} : vector<16x96xf32> to vector<16x8xf32>
    %5 = vector.extract_strided_slice %3 {offsets = [0, 8], sizes = [16, 8], strides = [1, 1]} : vector<16x96xf32> to vector<16x8xf32>
    %6 = vector.extract_strided_slice %3 {offsets = [0, 16], sizes = [16, 8], strides = [1, 1]} : vector<16x96xf32> to vector<16x8xf32>
    %7 = vector.extract_strided_slice %3 {offsets = [0, 24], sizes = [16, 8], strides = [1, 1]} : vector<16x96xf32> to vector<16x8xf32>
    %8 = tpu.concatenate %4, %5, %6, %7 in 0 : vector<16x8xf32>, vector<16x8xf32>, vector<16x8xf32>, vector<16x8xf32> -> vector<64x8xf32>
    %9 = vector.extract_strided_slice %3 {offsets = [0, 32], sizes = [16, 8], strides = [1, 1]} : vector<16x96xf32> to vector<16x8xf32>
    %10 = vector.extract_strided_slice %3 {offsets = [0, 40], sizes = [16, 8], strides = [1, 1]} : vector<16x96xf32> to vector<16x8xf32>
    %11 = vector.extract_strided_slice %3 {offsets = [0, 48], sizes = [16, 8], strides = [1, 1]} : vector<16x96xf32> to vector<16x8xf32>
    %12 = vector.extract_strided_slice %3 {offsets = [0, 56], sizes = [16, 8], strides = [1, 1]} : vector<16x96xf32> to vector<16x8xf32>
    %13 = tpu.concatenate %9, %10, %11, %12 in 0 : vector<16x8xf32>, vector<16x8xf32>, vector<16x8xf32>, vector<16x8xf32> -> vector<64x8xf32>
    %14 = vector.extract_strided_slice %3 {offsets = [0, 64], sizes = [16, 8], strides = [1, 1]} : vector<16x96xf32> to vector<16x8xf32>
    %15 = vector.extract_strided_slice %3 {offsets = [0, 72], sizes = [16, 8], strides = [1, 1]} : vector<16x96xf32> to vector<16x8xf32>
    %16 = vector.extract_strided_slice %3 {offsets = [0, 80], sizes = [16, 8], strides = [1, 1]} : vector<16x96xf32> to vector<16x8xf32>
    %17 = vector.extract_strided_slice %3 {offsets = [0, 88], sizes = [16, 8], strides = [1, 1]} : vector<16x96xf32> to vector<16x8xf32>
    %18 = tpu.concatenate %14, %15, %16, %17 in 0 : vector<16x8xf32>, vector<16x8xf32>, vector<16x8xf32>, vector<16x8xf32> -> vector<64x8xf32>
    %cst_3 = arith.constant dense<0.000000e+00> : vector<64x64xf32>
    %19 = tpu.matmul %8, %13, %cst_3 {dimension_numbers = #tpu.dot_dimension_numbers<[1], [1], [0], [0], [0, 0, 1, 0], [], []>} : vector<64x8xf32>, vector<64x8xf32>, vector<64x64xf32> -> vector<64x64xf32>
    %c0_4 = arith.constant 0 : index
    %c0_5 = arith.constant 0 : index
    %20 = vector.load %arg2[%c0_4, %c0_5] : memref<64x64xf32, #tpu.memory_space<vmem>>, vector<64x64xf32>
    %21 = arith.addf %19, %20 : vector<64x64xf32>
    %cst_6 = arith.constant dense<0xFF800000> : vector<64xf32>
    %22 = vector.multi_reduction <maximumf>, %21, %cst_6 [1] : vector<64x64xf32> to vector<64xf32>
    %23 = vector.shape_cast %22 : vector<64xf32> to vector<64x1xf32>
    %24 = vector.broadcast %23 : vector<64x1xf32> to vector<64x64xf32>
    %25 = arith.subf %21, %24 : vector<64x64xf32>
    %26 = math.exp %25 : vector<64x64xf32>
    %cst_7 = arith.constant dense<0.000000e+00> : vector<64xf32>
    %27 = vector.multi_reduction <add>, %26, %cst_7 [1] : vector<64x64xf32> to vector<64xf32>
    %28 = vector.shape_cast %27 : vector<64xf32> to vector<64x1xf32>
    %cst_8 = arith.constant dense<0.000000e+00> : vector<64x8xf32>
    %29 = tpu.matmul %26, %18, %cst_8 {dimension_numbers = #tpu.dot_dimension_numbers<[1], [0], [0], [1], [0, 0, 1, 1], [], []>} : vector<64x64xf32>, vector<64x8xf32>, vector<64x8xf32> -> vector<64x8xf32>
    %30 = tpu.reciprocal %28 : vector<64x1xf32> -> vector<64x1xf32>
    %31 = vector.broadcast %30 : vector<64x1xf32> to vector<64x8xf32>
    %32 = arith.mulf %29, %31 : vector<64x8xf32>
    %c0_9 = arith.constant 0 : index
    %c0_10 = arith.constant 0 : index
    %33 = vector.load %arg3[%c0_9, %c0_10] : memref<64x64xf32, #tpu.memory_space<vmem>>, vector<64x64xf32>
    %cst_11 = arith.constant dense<0.000000e+00> : vector<64x8xf32>
    %34 = tpu.matmul %33, %32, %cst_11 {dimension_numbers = #tpu.dot_dimension_numbers<[1], [0], [0], [1], [0, 0, 1, 1], [], []>} : vector<64x64xf32>, vector<64x8xf32>, vector<64x8xf32> -> vector<64x8xf32>
    %35 = vector.extract_strided_slice %34 {offsets = [0, 0], sizes = [16, 8], strides = [1, 1]} : vector<64x8xf32> to vector<16x8xf32>
    %36 = vector.extract_strided_slice %34 {offsets = [16, 0], sizes = [16, 8], strides = [1, 1]} : vector<64x8xf32> to vector<16x8xf32>
    %37 = vector.extract_strided_slice %34 {offsets = [32, 0], sizes = [16, 8], strides = [1, 1]} : vector<64x8xf32> to vector<16x8xf32>
    %38 = vector.extract_strided_slice %34 {offsets = [48, 0], sizes = [16, 8], strides = [1, 1]} : vector<64x8xf32> to vector<16x8xf32>
    %39 = tpu.concatenate %35, %36, %37, %38 in 1 : vector<16x8xf32>, vector<16x8xf32>, vector<16x8xf32>, vector<16x8xf32> -> vector<16x32xf32>
    %40 = vector.extract_strided_slice %1 {offsets = [0, 96], sizes = [32, 32], strides = [1, 1]} : vector<32x128xf32> to vector<32x32xf32>
    %cst_12 = arith.constant dense<0.000000e+00> : vector<16x32xf32>
    %41 = tpu.matmul %39, %40, %cst_12 {dimension_numbers = #tpu.dot_dimension_numbers<[1], [0], [0], [1], [0, 0, 1, 1], [], []>} : vector<16x32xf32>, vector<32x32xf32>, vector<16x32xf32> -> vector<16x32xf32>
    %c0_13 = arith.constant 0 : index
    %c0_14 = arith.constant 0 : index
    %42 = vector.load %arg4[%c0_13, %c0_14] : memref<16x32xf32, #tpu.memory_space<vmem>>, vector<16x32xf32>
    tpu.vector_store %arg4[%c0_13, %c0_14], %41 {strides = array<i32>} : memref<16x32xf32, #tpu.memory_space<vmem>>, vector<16x32xf32>,
    return
  }
}

</mosaic_0001>

<llo_original>
// kernel: multi_head_attention.1
$region0: #{multi_head_attention.1}
  #allocation0 [shape = 'u32[]', space=smem, size = 0x4, offset = 0x4, fixed_abs, tag = 'smem constant byte address 0x4 - core index']
  #allocation1 [shape = 'u32[144,128]{1,0:T(1,128)}', space=vmem, size = 0x12000, scoped, tag = 'internal scratch']
  %s0 = inlined_call_operand.vmem [shape: f32[16,32], index: 0, kind: input, shape index: {}]
  %s1 = inlined_call_operand.vmem [shape: f32[32,128], index: 1, kind: input, shape index: {}]
  %s2 = inlined_call_operand.vmem [shape: f32[64,64], index: 2, kind: input, shape index: {}]
  %s3 = inlined_call_operand.vmem [shape: f32[64,64], index: 3, kind: input, shape index: {}]
  %s4 = inlined_call_operand.hbm [shape: f32[16,32], index: 4, kind: output, shape index: {}]
  %s5 = sld [smem:[#allocation0]]
  $region26: #{multi_head_attention.1} parent=0
    _
  %s7 = ssub.s32 1, %s5
  %s8 = scalar_select 0, %s7, %s5
  $region1: #{multi_head_attention.1} parent=0
    #allocation2 [shape = 'u8[8192]{0}', space=vmem, size = 0x2000, scoped, tag = 'output window, operand 0, single buffered']
    #allocation3 [shape = 's32[1]{0}', space=sflag, size = 0x4, scoped, tag = 'scoped memory for multi_head_attention.1']
    %9 = vsyncpa [#allocation3], 0
    // Predicated region
    $region2: #{multi_head_attention.1} parent=1 // pred_check
      _
    $region3: #{multi_head_attention.1} parent=1 // pred_check_branch
      %11 = sbr.rel (0) target = $region5
    $region4: #{multi_head_attention.1} parent=1 // pred_region
      _
    $region5: #{multi_head_attention.1} parent=1 // pred_fallthru
      _
    // Predicated region
    $region6: #{multi_head_attention.1} parent=1 // pred_check
      _
    $region7: #{multi_head_attention.1} parent=1 // pred_check_branch
      %13 = sbr.rel (0) target = $region9
    $region8: #{multi_head_attention.1} parent=1 // pred_region
      _
    $region9: #{multi_head_attention.1} parent=1 // pred_fallthru
      _
    // Predicated region
    $region10: #{multi_head_attention.1} parent=1 // pred_check
      _
    $region11: #{multi_head_attention.1} parent=1 // pred_check_branch
      %15 = sbr.rel (0) target = $region13
    $region12: #{multi_head_attention.1} parent=1 // pred_region
      _
    $region13: #{multi_head_attention.1} parent=1 // pred_fallthru
      _
    // Predicated region
    $region14: #{multi_head_attention.1} parent=1 // pred_check
      _
    $region15: #{multi_head_attention.1} parent=1 // pred_check_branch
      %17 = sbr.rel (0) target = $region17
    $region16: #{multi_head_attention.1} parent=1 // pred_region
      _
    $region17: #{multi_head_attention.1} parent=1 // pred_fallthru
      _
    %v18 = vld [vmem:[%s0] sm:$0xff]
    %v19 = vld [vmem:[%s0 + $0x8] sm:$0xff]
    %v20 = vld [vmem:[%s1] sm:$0xff]
    %v21 = vld [vmem:[%s1 + $0x8] sm:$0xff]
    %v22 = vld [vmem:[%s1 + $0x10] sm:$0xff]
    %v23 = vld [vmem:[%s1 + $0x18] sm:$0xff]
    %vm24 = vcmask 261120
    %v26 = vsel %vm24, %v18, 0
    %v29 = vsel %vm24, %v19, 0
    %31 = vmatprep.subr.mxu0 0.0
    %32 = vmatpush1.msra.mxu0 %v20
    %33 = vmatprep.subr.mxu0 0.0
    %34 = vmatpush1.msra.mxu0 %v21
    %35 = vmatprep.subr.mxu0 0.0
    %36 = vmatpush1.msra.mxu0 %v22
    %37 = vmatprep.subr.mxu0 0.0
    %38 = vmatpush1.msra.mxu0 %v23
    %39 = vmatprep.subr.mxu0 0.0
    %40 = vmatpush1.msra.mxu0 0.0
    %41 = vmatprep.subr.mxu0 0.0
    %42 = vmatpush1.msra.mxu0 0.0
    %43 = vmatprep.subr.mxu0 0.0
    %44 = vmatpush1.msra.mxu0 0.0
    %45 = vmatprep.subr.mxu0 0.0
    %46 = vmatpush1.msra.mxu0 0.0
    %47 = vmatprep.subr.mxu0 0.0
    %48 = vmatpush1.msra.mxu0 0.0
    %49 = vmatprep.subr.mxu0 0.0
    %50 = vmatpush1.msra.mxu0 0.0
    %51 = vmatprep.subr.mxu0 0.0
    %52 = vmatpush1.msra.mxu0 0.0
    %53 = vmatprep.subr.mxu0 0.0
    %54 = vmatpush1.msra.mxu0 0.0
    %55 = vmatprep.subr.mxu0 0.0
    %56 = vmatpush1.msra.mxu0 0.0
    %57 = vmatprep.subr.mxu0 0.0
    %58 = vmatpush1.msra.mxu0 0.0
    %59 = vmatprep.subr.mxu0 0.0
    %60 = vmatpush1.msra.mxu0 0.0
    %61 = vmatprep.subr.mxu0 0.0
    %62 = vmatpush1.msra.mxu0 0.0
    %63 = vmatprep.subr.mxu0 0.0
    %64 = vmatpush1.msra.mxu0 0.0
    %65 = vmatprep.subr.mxu0 0.0
    %66 = vmatpush1.msra.mxu0 0.0
    %67 = vmatprep.subr.mxu0 0.0
    %68 = vmatpush1.msra.mxu0 0.0
    %69 = vmatprep.subr.mxu0 0.0
    %70 = vmatpush1.msra.mxu0 0.0
    %71 = vmatprep.subr.mxu0 0.0
    %72 = vmatpush1.msra.mxu0 0.0
    %73 = vmatprep.subr.mxu0 0.0
    %74 = vmatpush1.msra.mxu0 0.0
    %75 = vmatprep.subr.mxu0 0.0
    %76 = vmatpush1.msra.mxu0 0.0
    %77 = vmatprep.subr.mxu0 0.0
    %78 = vmatpush1.msra.mxu0 0.0
    %79 = vmatprep.subr.mxu0 0.0
    %80 = vmatpush1.msra.mxu0 0.0
    %81 = vmatprep.subr.mxu0 0.0
    %82 = vmatpush1.msra.mxu0 0.0
    %83 = vmatprep.subr.mxu0 0.0
    %84 = vmatpush1.msra.mxu0 0.0
    %85 = vmatprep.subr.mxu0 0.0
    %86 = vmatpush1.msra.mxu0 0.0
    %87 = vmatprep.subr.mxu0 0.0
    %88 = vmatpush1.msra.mxu0 0.0
    %89 = vmatprep.subr.mxu0 0.0
    %90 = vmatpush1.msra.mxu0 0.0
    %91 = vmatprep.subr.mxu0 0.0
    %92 = vmatpush1.msra.mxu0 0.0
    %93 = vmatprep.subr.mxu0 0.0
    %94 = vmatpush1.msra.mxu0 0.0
    %95 = vmatprep.mubr.f32.mxu0 0.0
    %96 = vmatmul.mubr.f32.gmra.mrb[0].mxu0 %v26
    %v97 = vpop.f32.mrb[0].mxu0
    %v98 = vadd.f32 0.0, %v97
    %v99 = vpop.f32.mrb[0].mxu0
    %100 = vmatprep.mubr.f32.mxu0 0.0
    %101 = vmatmul.mubr.f32.gmra.mrb[0].mxu0 %v29
    %v102 = vpop.f32.mrb[0].mxu0
    %v103 = vadd.f32 0.0, %v102
    %v104 = vpop.f32.mrb[0].mxu0
    %105 = vdwg.mxu0
    %108 = vrot.lane.b32.xlu0 %v98, 120
    %v109 = vpop.permute.xlu0 %108
    %110 = vrot.lane.b32.xlu0 %v103, 120
    %v111 = vpop.permute.xlu0 %110
    %112 = vrot.lane.b32.xlu0 %v98, 112
    %v113 = vpop.permute.xlu0 %112
    %114 = vrot.lane.b32.xlu0 %v103, 112
    %v115 = vpop.permute.xlu0 %114
    %116 = vrot.lane.b32.xlu0 %v98, 104
    %v117 = vpop.permute.xlu0 %116
    %118 = vrot.lane.b32.xlu0 %v103, 104
    %v119 = vpop.permute.xlu0 %118
    %v120 = vld [vmem:[%s2] sm:$0xff]
    %v121 = vld [vmem:[%s2 + $0x8] sm:$0xff]
    %v122 = vld [vmem:[%s2 + $0x10] sm:$0xff]
    %v123 = vld [vmem:[%s2 + $0x18] sm:$0xff]
    %v124 = vld [vmem:[%s2 + $0x20] sm:$0xff]
    %v125 = vld [vmem:[%s2 + $0x28] sm:$0xff]
    %v126 = vld [vmem:[%s2 + $0x30] sm:$0xff]
    %v127 = vld [vmem:[%s2 + $0x38] sm:$0xff]
    %128 = vrot.lane.b32.xlu0 %v98, 96
    %v129 = vpop.permute.xlu0 %128
    %130 = vrot.lane.b32.xlu0 %v103, 96
    %v131 = vpop.permute.xlu0 %130
    %132 = vrot.lane.b32.xlu0 %v109, 96
    %v133 = vpop.permute.xlu0 %132
    %134 = vrot.lane.b32.xlu0 %v111, 96
    %v135 = vpop.permute.xlu0 %134
    %136 = vrot.lane.b32.xlu0 %v113, 96
    %v137 = vpop.permute.xlu0 %136
    %138 = vrot.lane.b32.xlu0 %v115, 96
    %v139 = vpop.permute.xlu0 %138
    %140 = vrot.lane.b32.xlu0 %v117, 96
    %v141 = vpop.permute.xlu0 %140
    %142 = vrot.lane.b32.xlu0 %v119, 96
    %v143 = vpop.permute.xlu0 %142
    %vm144 = vcmask 64512
    %v145 = vsel %vm144, %v98, 0
    %v147 = vsel %vm144, %v103, 0
    %v149 = vsel %vm144, %v109, 0
    %v151 = vsel %vm144, %v111, 0
    %v153 = vsel %vm144, %v113, 0
    %v155 = vsel %vm144, %v115, 0
    %v157 = vsel %vm144, %v117, 0
    %v159 = vsel %vm144, %v119, 0
    %v161 = vsel %vm144, %v129, 0
    %v163 = vsel %vm144, %v131, 0
    %v165 = vsel %vm144, %v133, 0
    %v167 = vsel %vm144, %v135, 0
    %v169 = vsel %vm144, %v137, 0
    %v171 = vsel %vm144, %v139, 0
    %v173 = vsel %vm144, %v141, 0
    %v175 = vsel %vm144, %v143, 0
    %177 = vmatprep.subr.mxu0 0.0
    %178 = vmatpush1.xpose.msra.mxu0 %v161
    %179 = vmatprep.subr.mxu0 0.0
    %180 = vmatpush1.xpose.msra.mxu0 %v163
    %181 = vmatprep.subr.mxu0 0.0
    %182 = vmatpush1.xpose.msra.mxu0 %v165
    %183 = vmatprep.subr.mxu0 0.0
    %184 = vmatpush1.xpose.msra.mxu0 %v167
    %185 = vmatprep.subr.mxu0 0.0
    %186 = vmatpush1.xpose.msra.mxu0 %v169
    %187 = vmatprep.subr.mxu0 0.0
    %188 = vmatpush1.xpose.msra.mxu0 %v171
    %189 = vmatprep.subr.mxu0 0.0
    %190 = vmatpush1.xpose.msra.mxu0 %v173
    %191 = vmatprep.subr.mxu0 0.0
    %192 = vmatpush1.xpose.msra.mxu0 %v175
    %193 = vmatprep.subr.mxu0 0.0
    %194 = vmatpush1.xpose.msra.mxu0 0.0
    %195 = vmatprep.subr.mxu0 0.0
    %196 = vmatpush1.xpose.msra.mxu0 0.0
    %197 = vmatprep.subr.mxu0 0.0
    %198 = vmatpush1.xpose.msra.mxu0 0.0
    %199 = vmatprep.subr.mxu0 0.0
    %200 = vmatpush1.xpose.msra.mxu0 0.0
    %201 = vmatprep.subr.mxu0 0.0
    %202 = vmatpush1.xpose.msra.mxu0 0.0
    %203 = vmatprep.subr.mxu0 0.0
    %204 = vmatpush1.xpose.msra.mxu0 0.0
    %205 = vmatprep.subr.mxu0 0.0
    %206 = vmatpush1.xpose.msra.mxu0 0.0
    %207 = vmatprep.subr.mxu0 0.0
    %208 = vmatpush1.xpose.msra.mxu0 0.0
    %209 = vmatprep.subr.mxu0 0.0
    %210 = vmatpush1.xpose.msra.mxu0 0.0
    %211 = vmatprep.subr.mxu0 0.0
    %212 = vmatpush1.xpose.msra.mxu0 0.0
    %213 = vmatprep.subr.mxu0 0.0
    %214 = vmatpush1.xpose.msra.mxu0 0.0
    %215 = vmatprep.subr.mxu0 0.0
    %216 = vmatpush1.xpose.msra.mxu0 0.0
    %217 = vmatprep.subr.mxu0 0.0
    %218 = vmatpush1.xpose.msra.mxu0 0.0
    %219 = vmatprep.subr.mxu0 0.0
    %220 = vmatpush1.xpose.msra.mxu0 0.0
    %221 = vmatprep.subr.mxu0 0.0
    %222 = vmatpush1.xpose.msra.mxu0 0.0
    %223 = vmatprep.subr.mxu0 0.0
    %224 = vmatpush1.xpose.msra.mxu0 0.0
    %225 = vmatprep.subr.mxu0 0.0
    %226 = vmatpush1.xpose.msra.mxu0 0.0
    %227 = vmatprep.subr.mxu0 0.0
    %228 = vmatpush1.xpose.msra.mxu0 0.0
    %229 = vmatprep.subr.mxu0 0.0
    %230 = vmatpush1.xpose.msra.mxu0 0.0
    %231 = vmatprep.subr.mxu0 0.0
    %232 = vmatpush1.xpose.msra.mxu0 0.0
    %233 = vmatprep.subr.mxu0 0.0
    %234 = vmatpush1.xpose.msra.mxu0 0.0
    %235 = vmatprep.subr.mxu0 0.0
    %236 = vmatpush1.xpose.msra.mxu0 0.0
    %237 = vmatprep.subr.mxu0 0.0
    %238 = vmatpush1.xpose.msra.mxu0 0.0
    %239 = vmatprep.subr.mxu0 0.0
    %240 = vmatpush1.xpose.msra.mxu0 0.0
    %241 = vmatprep.mubr.f32.mxu0 0.0
    %242 = vmatmul.mubr.f32.gmra.mrb[0].mxu0 %v145
    %v243 = vpop.f32.mrb[0].mxu0
    %v244 = vadd.f32 %v120, %v243
    %v245 = vpop.f32.mrb[0].mxu0
    %246 = vmatprep.mubr.f32.mxu0 0.0
    %247 = vmatmul.mubr.f32.gmra.mrb[0].mxu0 %v147
    %v248 = vpop.f32.mrb[0].mxu0
    %v249 = vadd.f32 %v121, %v248
    %v250 = vpop.f32.mrb[0].mxu0
    %251 = vmatprep.mubr.f32.mxu0 0.0
    %252 = vmatmul.mubr.f32.gmra.mrb[0].mxu0 %v149
    %v253 = vpop.f32.mrb[0].mxu0
    %v254 = vadd.f32 %v122, %v253
    %v255 = vpop.f32.mrb[0].mxu0
    %256 = vmatprep.mubr.f32.mxu0 0.0
    %257 = vmatmul.mubr.f32.gmra.mrb[0].mxu0 %v151
    %v258 = vpop.f32.mrb[0].mxu0
    %v259 = vadd.f32 %v123, %v258
    %v260 = vpop.f32.mrb[0].mxu0
    %261 = vmatprep.mubr.f32.mxu0 0.0
    %262 = vmatmul.mubr.f32.gmra.mrb[0].mxu0 %v153
    %v263 = vpop.f32.mrb[0].mxu0
    %v264 = vadd.f32 %v124, %v263
    %v265 = vpop.f32.mrb[0].mxu0
    %266 = vmatprep.mubr.f32.mxu0 0.0
    %267 = vmatmul.mubr.f32.gmra.mrb[0].mxu0 %v155
    %v268 = vpop.f32.mrb[0].mxu0
    %v269 = vadd.f32 %v125, %v268
    %v270 = vpop.f32.mrb[0].mxu0
    %271 = vmatprep.mubr.f32.mxu0 0.0
    %272 = vmatmul.mubr.f32.gmra.mrb[0].mxu0 %v157
    %v273 = vpop.f32.mrb[0].mxu0
    %v274 = vadd.f32 %v126, %v273
    %v275 = vpop.f32.mrb[0].mxu0
    %276 = vmatprep.mubr.f32.mxu0 0.0
    %277 = vmatmul.mubr.f32.gmra.mrb[0].mxu0 %v159
    %v278 = vpop.f32.mrb[0].mxu0
    %v279 = vadd.f32 %v127, %v278
    %v280 = vpop.f32.mrb[0].mxu0
    %281 = vdwg.mxu0
    %vm282 = vcmask 523264
    %v283 = vsel %vm282, %v244, -inf
    %284 = vmax.xlane.f32.xlu0 %v283
    %v285 = vpop.xlane.xlu0 %284
    %v286 = vsel %vm282, %v249, -inf
    %287 = vmax.xlane.f32.xlu0 %v286
    %v288 = vpop.xlane.xlu0 %287
    %v289 = vsel %vm282, %v254, -inf
    %290 = vmax.xlane.f32.xlu0 %v289
    %v291 = vpop.xlane.xlu0 %290
    %v292 = vsel %vm282, %v259, -inf
    %293 = vmax.xlane.f32.xlu0 %v292
    %v294 = vpop.xlane.xlu0 %293
    %v295 = vsel %vm282, %v264, -inf
    %296 = vmax.xlane.f32.xlu0 %v295
    %v297 = vpop.xlane.xlu0 %296
    %v298 = vsel %vm282, %v269, -inf
    %299 = vmax.xlane.f32.xlu0 %v298
    %v300 = vpop.xlane.xlu0 %299
    %v301 = vsel %vm282, %v274, -inf
    %302 = vmax.xlane.f32.xlu0 %v301
    %v303 = vpop.xlane.xlu0 %302
    %v304 = vsel %vm282, %v279, -inf
    %305 = vmax.xlane.f32.xlu0 %v304
    %v306 = vpop.xlane.xlu0 %305
    %v307 = vsub.f32 %v244, %v285
    %v308 = vsub.f32 %v249, %v288
    %v309 = vsub.f32 %v254, %v291
    %v310 = vsub.f32 %v259, %v294
    %v311 = vsub.f32 %v264, %v297
    %v312 = vsub.f32 %v269, %v300
    %v313 = vsub.f32 %v274, %v303
    %v314 = vsub.f32 %v279, %v306
    %v315 = vmul.f32 %v307, 1.442695
    %v316 = vpow.pop %v315
    %v317 = vmul.f32 %v308, 1.442695
    %v318 = vpow.pop %v317
    %v319 = vmul.f32 %v309, 1.442695
    %v320 = vpow.pop %v319
    %v321 = vmul.f32 %v310, 1.442695
    %v322 = vpow.pop %v321
    %v323 = vmul.f32 %v311, 1.442695
    %v324 = vpow.pop %v323
    %v325 = vmul.f32 %v312, 1.442695
    %v326 = vpow.pop %v325
    %v327 = vmul.f32 %v313, 1.442695
    %v328 = vpow.pop %v327
    %v329 = vmul.f32 %v314, 1.442695
    %v330 = vpow.pop %v329
    %v331 = vsel %vm282, %v316, 0.0
    %332 = vadd.xlane.f32.xlu0 %v331
    %v333 = vpop.xlane.xlu0 %332
    %v334 = vsel %vm282, %v318, 0.0
    %335 = vadd.xlane.f32.xlu0 %v334
    %v336 = vpop.xlane.xlu0 %335
    %v337 = vsel %vm282, %v320, 0.0
    %338 = vadd.xlane.f32.xlu0 %v337
    %v339 = vpop.xlane.xlu0 %338
    %v340 = vsel %vm282, %v322, 0.0
    %341 = vadd.xlane.f32.xlu0 %v340
    %v342 = vpop.xlane.xlu0 %341
    %v343 = vsel %vm282, %v324, 0.0
    %344 = vadd.xlane.f32.xlu0 %v343
    %v345 = vpop.xlane.xlu0 %344
    %v346 = vsel %vm282, %v326, 0.0
    %347 = vadd.xlane.f32.xlu0 %v346
    %v348 = vpop.xlane.xlu0 %347
    %v349 = vsel %vm282, %v328, 0.0
    %350 = vadd.xlane.f32.xlu0 %v349
    %v351 = vpop.xlane.xlu0 %350
    %v352 = vsel %vm282, %v330, 0.0
    %353 = vadd.xlane.f32.xlu0 %v352
    %v354 = vpop.xlane.xlu0 %353
    %355 = vrot.lane.b32.xlu0 %v98, 64
    %v356 = vpop.permute.xlu0 %355
    %357 = vrot.lane.b32.xlu0 %v103, 64
    %v358 = vpop.permute.xlu0 %357
    %359 = vrot.lane.b32.xlu0 %v109, 64
    %v360 = vpop.permute.xlu0 %359
    %361 = vrot.lane.b32.xlu0 %v111, 64
    %v362 = vpop.permute.xlu0 %361
    %363 = vrot.lane.b32.xlu0 %v113, 64
    %v364 = vpop.permute.xlu0 %363
    %365 = vrot.lane.b32.xlu0 %v115, 64
    %v366 = vpop.permute.xlu0 %365
    %367 = vrot.lane.b32.xlu0 %v117, 64
    %v368 = vpop.permute.xlu0 %367
    %369 = vrot.lane.b32.xlu0 %v119, 64
    %v370 = vpop.permute.xlu0 %369
    %v380 = vsel %vm282, %v316, 0
    %v383 = vsel %vm282, %v318, 0
    %v386 = vsel %vm282, %v320, 0
    %v389 = vsel %vm282, %v322, 0
    %v392 = vsel %vm282, %v324, 0
    %v395 = vsel %vm282, %v326, 0
    %v398 = vsel %vm282, %v328, 0
    %v401 = vsel %vm282, %v330, 0
    %403 = vmatprep.subr.mxu0 0.0
    %404 = vmatpush1.msra.mxu0 %v356
    %405 = vmatprep.subr.mxu0 0.0
    %406 = vmatpush1.msra.mxu0 %v358
    %407 = vmatprep.subr.mxu0 0.0
    %408 = vmatpush1.msra.mxu0 %v360
    %409 = vmatprep.subr.mxu0 0.0
    %410 = vmatpush1.msra.mxu0 %v362
    %411 = vmatprep.subr.mxu0 0.0
    %412 = vmatpush1.msra.mxu0 %v364
    %413 = vmatprep.subr.mxu0 0.0
    %414 = vmatpush1.msra.mxu0 %v366
    %415 = vmatprep.subr.mxu0 0.0
    %416 = vmatpush1.msra.mxu0 %v368
    %417 = vmatprep.subr.mxu0 0.0
    %418 = vmatpush1.msra.mxu0 %v370
    %419 = vmatprep.subr.mxu0 0.0
    %420 = vmatpush1.msra.mxu0 0.0
    %421 = vmatprep.subr.mxu0 0.0
    %422 = vmatpush1.msra.mxu0 0.0
    %423 = vmatprep.subr.mxu0 0.0
    %424 = vmatpush1.msra.mxu0 0.0
    %425 = vmatprep.subr.mxu0 0.0
    %426 = vmatpush1.msra.mxu0 0.0
    %427 = vmatprep.subr.mxu0 0.0
    %428 = vmatpush1.msra.mxu0 0.0
    %429 = vmatprep.subr.mxu0 0.0
    %430 = vmatpush1.msra.mxu0 0.0
    %431 = vmatprep.subr.mxu0 0.0
    %432 = vmatpush1.msra.mxu0 0.0
    %433 = vmatprep.subr.mxu0 0.0
    %434 = vmatpush1.msra.mxu0 0.0
    %435 = vmatprep.subr.mxu0 0.0
    %436 = vmatpush1.msra.mxu0 0.0
    %437 = vmatprep.subr.mxu0 0.0
    %438 = vmatpush1.msra.mxu0 0.0
    %439 = vmatprep.subr.mxu0 0.0
    %440 = vmatpush1.msra.mxu0 0.0
    %441 = vmatprep.subr.mxu0 0.0
    %442 = vmatpush1.msra.mxu0 0.0
    %443 = vmatprep.subr.mxu0 0.0
    %444 = vmatpush1.msra.mxu0 0.0
    %445 = vmatprep.subr.mxu0 0.0
    %446 = vmatpush1.msra.mxu0 0.0
    %447 = vmatprep.subr.mxu0 0.0
    %448 = vmatpush1.msra.mxu0 0.0
    %449 = vmatprep.subr.mxu0 0.0
    %450 = vmatpush1.msra.mxu0 0.0
    %451 = vmatprep.subr.mxu0 0.0
    %452 = vmatpush1.msra.mxu0 0.0
    %453 = vmatprep.subr.mxu0 0.0
    %454 = vmatpush1.msra.mxu0 0.0
    %455 = vmatprep.subr.mxu0 0.0
    %456 = vmatpush1.msra.mxu0 0.0
    %457 = vmatprep.subr.mxu0 0.0
    %458 = vmatpush1.msra.mxu0 0.0
    %459 = vmatprep.subr.mxu0 0.0
    %460 = vmatpush1.msra.mxu0 0.0
    %461 = vmatprep.subr.mxu0 0.0
    %462 = vmatpush1.msra.mxu0 0.0
    %463 = vmatprep.subr.mxu0 0.0
    %464 = vmatpush1.msra.mxu0 0.0
    %465 = vmatprep.subr.mxu0 0.0
    %466 = vmatpush1.msra.mxu0 0.0
    %467 = vmatprep.mubr.f32.mxu0 0.0
    %468 = vmatmul.mubr.f32.gmra.mrb[0].mxu0 %v380
    %v469 = vpop.f32.mrb[0].mxu0
    %v470 = vadd.f32 0.0, %v469
    %v471 = vpop.f32.mrb[0].mxu0
    %472 = vmatprep.mubr.f32.mxu0 0.0
    %473 = vmatmul.mubr.f32.gmra.mrb[0].mxu0 %v383
    %v474 = vpop.f32.mrb[0].mxu0
    %v475 = vadd.f32 0.0, %v474
    %v476 = vpop.f32.mrb[0].mxu0
    %477 = vmatprep.mubr.f32.mxu0 0.0
    %478 = vmatmul.mubr.f32.gmra.mrb[0].mxu0 %v386
    %v479 = vpop.f32.mrb[0].mxu0
    %v480 = vadd.f32 0.0, %v479
    %v481 = vpop.f32.mrb[0].mxu0
    %482 = vmatprep.mubr.f32.mxu0 0.0
    %483 = vmatmul.mubr.f32.gmra.mrb[0].mxu0 %v389
    %v484 = vpop.f32.mrb[0].mxu0
    %v485 = vadd.f32 0.0, %v484
    %v486 = vpop.f32.mrb[0].mxu0
    %487 = vmatprep.mubr.f32.mxu0 0.0
    %488 = vmatmul.mubr.f32.gmra.mrb[0].mxu0 %v392
    %v489 = vpop.f32.mrb[0].mxu0
    %v490 = vadd.f32 0.0, %v489
    %v491 = vpop.f32.mrb[0].mxu0
    %492 = vmatprep.mubr.f32.mxu0 0.0
    %493 = vmatmul.mubr.f32.gmra.mrb[0].mxu0 %v395
    %v494 = vpop.f32.mrb[0].mxu0
    %v495 = vadd.f32 0.0, %v494
    %v496 = vpop.f32.mrb[0].mxu0
    %497 = vmatprep.mubr.f32.mxu0 0.0
    %498 = vmatmul.mubr.f32.gmra.mrb[0].mxu0 %v398
    %v499 = vpop.f32.mrb[0].mxu0
    %v500 = vadd.f32 0.0, %v499
    %v501 = vpop.f32.mrb[0].mxu0
    %502 = vmatprep.mubr.f32.mxu0 0.0
    %503 = vmatmul.mubr.f32.gmra.mrb[0].mxu0 %v401
    %v504 = vpop.f32.mrb[0].mxu0
    %v505 = vadd.f32 0.0, %v504
    %v506 = vpop.f32.mrb[0].mxu0
    %507 = vdwg.mxu0
    %v508 = vrcp.pop %v333
    %v509 = vrcp.pop %v336
    %v510 = vrcp.pop %v339
    %v511 = vrcp.pop %v342
    %v512 = vrcp.pop %v345
    %v513 = vrcp.pop %v348
    %v514 = vrcp.pop %v351
    %v515 = vrcp.pop %v354
    %v516 = vmul.f32 %v470, %v508
    %v517 = vmul.f32 %v475, %v509
    %v518 = vmul.f32 %v480, %v510
    %v519 = vmul.f32 %v485, %v511
    %v520 = vmul.f32 %v490, %v512
    %v521 = vmul.f32 %v495, %v513
    %v522 = vmul.f32 %v500, %v514
    %v523 = vmul.f32 %v505, %v515
    %v524 = vld [vmem:[%s3] sm:$0xff]
    %v525 = vld [vmem:[%s3 + $0x8] sm:$0xff]
    %v526 = vld [vmem:[%s3 + $0x10] sm:$0xff]
    %v527 = vld [vmem:[%s3 + $0x18] sm:$0xff]
    %v528 = vld [vmem:[%s3 + $0x20] sm:$0xff]
    %v529 = vld [vmem:[%s3 + $0x28] sm:$0xff]
    %v530 = vld [vmem:[%s3 + $0x30] sm:$0xff]
    %v531 = vld [vmem:[%s3 + $0x38] sm:$0xff]
    %v533 = vsel %vm282, %v524, 0
    %v536 = vsel %vm282, %v525, 0
    %v539 = vsel %vm282, %v526, 0
    %v542 = vsel %vm282, %v527, 0
    %v545 = vsel %vm282, %v528, 0
    %v548 = vsel %vm282, %v529, 0
    %v551 = vsel %vm282, %v530, 0
    %v554 = vsel %vm282, %v531, 0
    %556 = vmatprep.subr.mxu0 0.0
    %557 = vmatpush1.msra.mxu0 %v516
    %558 = vmatprep.subr.mxu0 0.0
    %559 = vmatpush1.msra.mxu0 %v517
    %560 = vmatprep.subr.mxu0 0.0
    %561 = vmatpush1.msra.mxu0 %v518
    %562 = vmatprep.subr.mxu0 0.0
    %563 = vmatpush1.msra.mxu0 %v519
    %564 = vmatprep.subr.mxu0 0.0
    %565 = vmatpush1.msra.mxu0 %v520
    %566 = vmatprep.subr.mxu0 0.0
    %567 = vmatpush1.msra.mxu0 %v521
    %568 = vmatprep.subr.mxu0 0.0
    %569 = vmatpush1.msra.mxu0 %v522
    %570 = vmatprep.subr.mxu0 0.0
    %571 = vmatpush1.msra.mxu0 %v523
    %572 = vmatprep.subr.mxu0 0.0
    %573 = vmatpush1.msra.mxu0 0.0
    %574 = vmatprep.subr.mxu0 0.0
    %575 = vmatpush1.msra.mxu0 0.0
    %576 = vmatprep.subr.mxu0 0.0
    %577 = vmatpush1.msra.mxu0 0.0
    %578 = vmatprep.subr.mxu0 0.0
    %579 = vmatpush1.msra.mxu0 0.0
    %580 = vmatprep.subr.mxu0 0.0
    %581 = vmatpush1.msra.mxu0 0.0
    %582 = vmatprep.subr.mxu0 0.0
    %583 = vmatpush1.msra.mxu0 0.0
    %584 = vmatprep.subr.mxu0 0.0
    %585 = vmatpush1.msra.mxu0 0.0
    %586 = vmatprep.subr.mxu0 0.0
    %587 = vmatpush1.msra.mxu0 0.0
    %588 = vmatprep.subr.mxu0 0.0
    %589 = vmatpush1.msra.mxu0 0.0
    %590 = vmatprep.subr.mxu0 0.0
    %591 = vmatpush1.msra.mxu0 0.0
    %592 = vmatprep.subr.mxu0 0.0
    %593 = vmatpush1.msra.mxu0 0.0
    %594 = vmatprep.subr.mxu0 0.0
    %595 = vmatpush1.msra.mxu0 0.0
    %596 = vmatprep.subr.mxu0 0.0
    %597 = vmatpush1.msra.mxu0 0.0
    %598 = vmatprep.subr.mxu0 0.0
    %599 = vmatpush1.msra.mxu0 0.0
    %600 = vmatprep.subr.mxu0 0.0
    %601 = vmatpush1.msra.mxu0 0.0
    %602 = vmatprep.subr.mxu0 0.0
    %603 = vmatpush1.msra.mxu0 0.0
    %604 = vmatprep.subr.mxu0 0.0
    %605 = vmatpush1.msra.mxu0 0.0
    %606 = vmatprep.subr.mxu0 0.0
    %607 = vmatpush1.msra.mxu0 0.0
    %608 = vmatprep.subr.mxu0 0.0
    %609 = vmatpush1.msra.mxu0 0.0
    %610 = vmatprep.subr.mxu0 0.0
    %611 = vmatpush1.msra.mxu0 0.0
    %612 = vmatprep.subr.mxu0 0.0
    %613 = vmatpush1.msra.mxu0 0.0
    %614 = vmatprep.subr.mxu0 0.0
    %615 = vmatpush1.msra.mxu0 0.0
    %616 = vmatprep.subr.mxu0 0.0
    %617 = vmatpush1.msra.mxu0 0.0
    %618 = vmatprep.subr.mxu0 0.0
    %619 = vmatpush1.msra.mxu0 0.0
    %620 = vmatprep.mubr.f32.mxu0 0.0
    %621 = vmatmul.mubr.f32.gmra.mrb[0].mxu0 %v533
    %v622 = vpop.f32.mrb[0].mxu0
    %v623 = vadd.f32 0.0, %v622
    %v624 = vpop.f32.mrb[0].mxu0
    %625 = vmatprep.mubr.f32.mxu0 0.0
    %626 = vmatmul.mubr.f32.gmra.mrb[0].mxu0 %v536
    %v627 = vpop.f32.mrb[0].mxu0
    %v628 = vadd.f32 0.0, %v627
    %v629 = vpop.f32.mrb[0].mxu0
    %630 = vmatprep.mubr.f32.mxu0 0.0
    %631 = vmatmul.mubr.f32.gmra.mrb[0].mxu0 %v539
    %v632 = vpop.f32.mrb[0].mxu0
    %v633 = vadd.f32 0.0, %v632
    %v634 = vpop.f32.mrb[0].mxu0
    %635 = vmatprep.mubr.f32.mxu0 0.0
    %636 = vmatmul.mubr.f32.gmra.mrb[0].mxu0 %v542
    %v637 = vpop.f32.mrb[0].mxu0
    %v638 = vadd.f32 0.0, %v637
    %v639 = vpop.f32.mrb[0].mxu0
    %640 = vmatprep.mubr.f32.mxu0 0.0
    %641 = vmatmul.mubr.f32.gmra.mrb[0].mxu0 %v545
    %v642 = vpop.f32.mrb[0].mxu0
    %v643 = vadd.f32 0.0, %v642
    %v644 = vpop.f32.mrb[0].mxu0
    %645 = vmatprep.mubr.f32.mxu0 0.0
    %646 = vmatmul.mubr.f32.gmra.mrb[0].mxu0 %v548
    %v647 = vpop.f32.mrb[0].mxu0
    %v648 = vadd.f32 0.0, %v647
    %v649 = vpop.f32.mrb[0].mxu0
    %650 = vmatprep.mubr.f32.mxu0 0.0
    %651 = vmatmul.mubr.f32.gmra.mrb[0].mxu0 %v551
    %v652 = vpop.f32.mrb[0].mxu0
    %v653 = vadd.f32 0.0, %v652
    %v654 = vpop.f32.mrb[0].mxu0
    %655 = vmatprep.mubr.f32.mxu0 0.0
    %656 = vmatmul.mubr.f32.gmra.mrb[0].mxu0 %v554
    %v657 = vpop.f32.mrb[0].mxu0
    %v658 = vadd.f32 0.0, %v657
    %v659 = vpop.f32.mrb[0].mxu0
    %660 = vdwg.mxu0
    %663 = vrot.lane.b32.xlu0 %v633, 8
    %v664 = vpop.permute.xlu0 %663
    %665 = vrot.lane.b32.xlu0 %v638, 8
    %v666 = vpop.permute.xlu0 %665
    %671 = vrot.lane.b32.xlu0 %v643, 16
    %v672 = vpop.permute.xlu0 %671
    %673 = vrot.lane.b32.xlu0 %v648, 16
    %v674 = vpop.permute.xlu0 %673
    %679 = vrot.lane.b32.xlu0 %v653, 24
    %v680 = vpop.permute.xlu0 %679
    %681 = vrot.lane.b32.xlu0 %v658, 24
    %v682 = vpop.permute.xlu0 %681
    %v685 = vsel %vm144, %v623, %v664
    %v686 = vsel %vm144, %v628, %v666
    %vm687 = vcmask 130048
    %v688 = vsel %vm687, %v685, %v672
    %v689 = vsel %vm687, %v686, %v674
    %vm690 = vcmask 195584
    %v691 = vsel %vm690, %v688, %v680
    %v692 = vsel %vm690, %v689, %v682
    %697 = vrot.lane.b32.xlu0 %v20, 32
    %v698 = vpop.permute.xlu0 %697
    %699 = vrot.lane.b32.xlu0 %v21, 32
    %v700 = vpop.permute.xlu0 %699
    %701 = vrot.lane.b32.xlu0 %v22, 32
    %v702 = vpop.permute.xlu0 %701
    %703 = vrot.lane.b32.xlu0 %v23, 32
    %v704 = vpop.permute.xlu0 %703
    %v710 = vsel %vm24, %v691, 0
    %v713 = vsel %vm24, %v692, 0
    %715 = vmatprep.subr.mxu0 0.0
    %716 = vmatpush1.msra.mxu0 %v698
    %717 = vmatprep.subr.mxu0 0.0
    %718 = vmatpush1.msra.mxu0 %v700
    %719 = vmatprep.subr.mxu0 0.0
    %720 = vmatpush1.msra.mxu0 %v702
    %721 = vmatprep.subr.mxu0 0.0
    %722 = vmatpush1.msra.mxu0 %v704
    %723 = vmatprep.subr.mxu0 0.0
    %724 = vmatpush1.msra.mxu0 0.0
    %725 = vmatprep.subr.mxu0 0.0
    %726 = vmatpush1.msra.mxu0 0.0
    %727 = vmatprep.subr.mxu0 0.0
    %728 = vmatpush1.msra.mxu0 0.0
    %729 = vmatprep.subr.mxu0 0.0
    %730 = vmatpush1.msra.mxu0 0.0
    %731 = vmatprep.subr.mxu0 0.0
    %732 = vmatpush1.msra.mxu0 0.0
    %733 = vmatprep.subr.mxu0 0.0
    %734 = vmatpush1.msra.mxu0 0.0
    %735 = vmatprep.subr.mxu0 0.0
    %736 = vmatpush1.msra.mxu0 0.0
    %737 = vmatprep.subr.mxu0 0.0
    %738 = vmatpush1.msra.mxu0 0.0
    %739 = vmatprep.subr.mxu0 0.0
    %740 = vmatpush1.msra.mxu0 0.0
    %741 = vmatprep.subr.mxu0 0.0
    %742 = vmatpush1.msra.mxu0 0.0
    %743 = vmatprep.subr.mxu0 0.0
    %744 = vmatpush1.msra.mxu0 0.0
    %745 = vmatprep.subr.mxu0 0.0
    %746 = vmatpush1.msra.mxu0 0.0
    %747 = vmatprep.subr.mxu0 0.0
    %748 = vmatpush1.msra.mxu0 0.0
    %749 = vmatprep.subr.mxu0 0.0
    %750 = vmatpush1.msra.mxu0 0.0
    %751 = vmatprep.subr.mxu0 0.0
    %752 = vmatpush1.msra.mxu0 0.0
    %753 = vmatprep.subr.mxu0 0.0
    %754 = vmatpush1.msra.mxu0 0.0
    %755 = vmatprep.subr.mxu0 0.0
    %756 = vmatpush1.msra.mxu0 0.0
    %757 = vmatprep.subr.mxu0 0.0
    %758 = vmatpush1.msra.mxu0 0.0
    %759 = vmatprep.subr.mxu0 0.0
    %760 = vmatpush1.msra.mxu0 0.0
    %761 = vmatprep.subr.mxu0 0.0
    %762 = vmatpush1.msra.mxu0 0.0
    %763 = vmatprep.subr.mxu0 0.0
    %764 = vmatpush1.msra.mxu0 0.0
    %765 = vmatprep.subr.mxu0 0.0
    %766 = vmatpush1.msra.mxu0 0.0
    %767 = vmatprep.subr.mxu0 0.0
    %768 = vmatpush1.msra.mxu0 0.0
    %769 = vmatprep.subr.mxu0 0.0
    %770 = vmatpush1.msra.mxu0 0.0
    %771 = vmatprep.subr.mxu0 0.0
    %772 = vmatpush1.msra.mxu0 0.0
    %773 = vmatprep.subr.mxu0 0.0
    %774 = vmatpush1.msra.mxu0 0.0
    %775 = vmatprep.subr.mxu0 0.0
    %776 = vmatpush1.msra.mxu0 0.0
    %777 = vmatprep.subr.mxu0 0.0
    %778 = vmatpush1.msra.mxu0 0.0
    %779 = vmatprep.mubr.f32.mxu0 0.0
    %780 = vmatmul.mubr.f32.gmra.mrb[0].mxu0 %v710
    %v781 = vpop.f32.mrb[0].mxu0
    %v782 = vadd.f32 0.0, %v781
    %v783 = vpop.f32.mrb[0].mxu0
    %784 = vmatprep.mubr.f32.mxu0 0.0
    %785 = vmatmul.mubr.f32.gmra.mrb[0].mxu0 %v713
    %v786 = vpop.f32.mrb[0].mxu0
    %v787 = vadd.f32 0.0, %v786
    %v788 = vpop.f32.mrb[0].mxu0
    %789 = vdwg.mxu0
    %790 = vst.msk [vmem:[#allocation2] sm:$0xff] %vm24, %v782
    %791 = vst.msk [vmem:[#allocation2 + $0x8] sm:$0xff] %vm24, %v787
    // Predicated region
    $region18: #{multi_head_attention.1} parent=1 // pred_check
      _
    $region19: #{multi_head_attention.1} parent=1 // pred_check_branch
      %793 = sbr.rel (0) target = $region21
    $region20: #{multi_head_attention.1} parent=1 // pred_region
      %s795 = ssub.s32 256, 256
      %796 = vsyncadd [#allocation3], %s795
      %s797 = sshll.u32 [#allocation2], 4
      %s798 = int_to_ptr.vmem [resolvable:$true] %s797
      %803 = dma.vmem_to_hbm [thread:$0]  %s798, 256, %s4, [#allocation3], 128, 128, 8
    $region21: #{multi_head_attention.1} parent=1 // pred_fallthru
      _
    // Predicated region
    $region22: #{multi_head_attention.1} parent=1 // pred_check
      _
    $region23: #{multi_head_attention.1} parent=1 // pred_check_branch
      %805 = sbr.rel (0) target = $region25
    $region24: #{multi_head_attention.1} parent=1 // pred_region
      %806 = dma.done [#allocation3], 256
    $region25: #{multi_head_attention.1} parent=1 // pred_fallthru
      _
    %807 = vsyncpa [#allocation3], 1

</llo_original>
